<compile_context>
chip_gen: v7x
topology: tpu7x:2x2x1
jax: 0.10.0
libtpu: 0.0.40
codegen_flags: <defaults>
</compile_context>

<pallas_src>
import functools

import numpy as np

import jax
import jax.numpy as jnp
from jax.experimental import pallas as pl
from jax.experimental.pallas import tpu as pltpu


# ----------------------------------------------------------------------------
# Fused kernel: one chunk of `bt` batch elements per grid step.
#   x1: (bt*N, C)  x2/x3: (bt*N1, C)   w*: (C, C) bf16 (pre-transposed, scale
#   folded into wq)   bp: (1, C) f32   mask: (H*N1, C) bf16 0/1 head mask
#   out: (bt*N, C)
# ----------------------------------------------------------------------------
def _cross_attn_kernel(x1_ref, x2_ref, x3_ref, wq_ref, wk_ref, wv_ref,
                       wp_ref, bp_ref, mask_ref, o_ref, *, n, n1, num_heads):
    bt = x1_ref.shape[0] // n

    # bf16 operands for every MXU matmul; accumulate in f32.
    x1 = x1_ref[...].astype(jnp.bfloat16)          # (bt*n,  c)
    x2 = x2_ref[...].astype(jnp.bfloat16)          # (bt*n1, c)
    x3 = x3_ref[...].astype(jnp.bfloat16)          # (bt*n1, c)

    # q/k/v projections over all rows of the chunk at once (qkv_bias=False,
    # matching the module default).  Attention scale is already in wq.
    q = jnp.dot(x1, wq_ref[...], preferred_element_type=jnp.float32)
    k = jnp.dot(x2, wk_ref[...], preferred_element_type=jnp.float32)
    v = jnp.dot(x3, wv_ref[...], preferred_element_type=jnp.float32)
    q = q.astype(jnp.bfloat16)
    k = k.astype(jnp.bfloat16)
    v = v.astype(jnp.bfloat16)

    mask = mask_ref[...]                           # (h*n1, c) bf16 0/1

    outs = []
    for b in range(bt):                            # small static batch loop
        qb = q[b * n:(b + 1) * n, :]               # (n,  c)
        kb = k[b * n1:(b + 1) * n1, :]             # (n1, c)
        vb = v[b * n1:(b + 1) * n1, :]             # (n1, c)

        # Head-block-diagonal packing: row j = h*n1 + m holds k/v row m,
        # zeroed outside head h's channel slice.
        k_pack = jnp.concatenate([kb] * num_heads, axis=0) * mask   # (h*n1, c)
        v_pack = jnp.concatenate([vb] * num_heads, axis=0) * mask   # (h*n1, c)

        # Scores for ALL heads in one matmul: columns h*n1:(h+1)*n1 == q_h @ k_h^T.
        s = jax.lax.dot_general(qb, k_pack,
                                (((1,), (1,)), ((), ())),
                                preferred_element_type=jnp.float32)  # (n, h*n1)

        # Per-row (all-head) max is constant within every head segment, so it is
        # a valid softmax stabiliser (assumes logit spread per row < ~80).
        m = jnp.max(s, axis=-1, keepdims=True)
        p = jnp.exp(s - m).astype(jnp.bfloat16)                      # (n, h*n1)

        # Unnormalised head outputs land directly in their channel slots;
        # p @ mask broadcasts each head's softmax denominator over its channels.
        o_un = jnp.dot(p, v_pack, preferred_element_type=jnp.float32)  # (n, c)
        denom = jnp.dot(p, mask, preferred_element_type=jnp.float32)   # (n, c)
        outs.append(o_un / denom)                  # exact f32 divide

    attn_out = outs[0] if bt == 1 else jnp.concatenate(outs, axis=0)   # (bt*n, c)

    # Output projection + bias, single matmul over the whole chunk.
    out = jnp.dot(attn_out.astype(jnp.bfloat16), wp_ref[...],
                  preferred_element_type=jnp.float32)
    out = out + bp_ref[...]                        # (1, c) f32 broadcast
    o_ref[...] = out.astype(o_ref.dtype)


def _pick_block_b(B, N, N1, max_rows=1024):
    """Largest divisor of B whose row blocks are sublane-aligned (or the full array)."""
    for d in range(B, 0, -1):
        if B % d:
            continue
        if d * max(N, N1) > max_rows:
            continue
        if d == B or ((d * N) % 8 == 0 and (d * N1) % 8 == 0):
            return d
    return B


# ----------------------------------------------------------------------------
# Full Cross_Attention forward
# ----------------------------------------------------------------------------
def cross_attention_forward(x_1, x_2, x_3, params, num_heads, *, block_b=None):
    B, N, C = x_1.shape
    _, N1, _ = x_3.shape
    assert C % num_heads == 0
    hd = C // num_heads
    scale = hd ** (-0.5)

    if block_b is None:
        block_b = _pick_block_b(B, N, N1)
    assert B % block_b == 0
    grid = (B // block_b,)

    bf16 = jnp.bfloat16

    # One-time weight prep (tiny CxC): transpose so the kernel computes x @ W,
    # fold the attention scale into wq, and cast to bf16 for the MXU.
    wq_t = (params["wq"].T * scale).astype(bf16)
    wk_t = params["wk"].T.astype(bf16)
    wv_t = params["wv"].T.astype(bf16)
    wp_t = params["wp"].T.astype(bf16)
    bp = params["bp"].reshape(1, C).astype(jnp.float32)

    # Static 0/1 head mask: mask[h*N1 + m, c] = 1 iff channel c belongs to head h.
    head_of_row = np.arange(num_heads * N1) // N1
    head_of_col = np.arange(C) // hd
    mask = jnp.asarray((head_of_row[:, None] == head_of_col[None, :]), dtype=bf16)

    # Row-flattened views (free reshapes at XLA level).
    x1_2d = x_1.reshape(B * N, C)
    x2_2d = x_2.reshape(B * N1, C)
    x3_2d = x_3.reshape(B * N1, C)

    kern = functools.partial(_cross_attn_kernel, n=N, n1=N1, num_heads=num_heads)
    const = lambda i: (0, 0)
    rows = lambda i: (i, 0)

    out2d = pl.pallas_call(
        kern,
        out_shape=jax.ShapeDtypeStruct((B * N, C), x_1.dtype),
        grid=grid,
        in_specs=[
            pl.BlockSpec((block_b * N, C), rows),
            pl.BlockSpec((block_b * N1, C), rows),
            pl.BlockSpec((block_b * N1, C), rows),
            pl.BlockSpec((C, C), const),
            pl.BlockSpec((C, C), const),
            pl.BlockSpec((C, C), const),
            pl.BlockSpec((C, C), const),
            pl.BlockSpec((1, C), const),
            pl.BlockSpec((num_heads * N1, C), const),
        ],
        out_specs=pl.BlockSpec((block_b * N, C), rows),
        compiler_params=pltpu.CompilerParams(
            dimension_semantics=("parallel",)),
    )(x1_2d, x2_2d, x3_2d, wq_t, wk_t, wv_t, wp_t, bp, mask)

    return out2d.reshape(B, N, C)


# ----------------------------------------------------------------------------
# Pure-JAX f32 reference (for a sanity check)
# ----------------------------------------------------------------------------
def reference_forward(x_1, x_2, x_3, params, num_heads):
    B, N, C = x_1.shape
    _, N1, _ = x_3.shape
    hd = C // num_heads
    scale = hd ** (-0.5)
    q = (x_1 @ params["wq"].T).reshape(B, N, num_heads, hd).transpose(0, 2, 1, 3)
    k = (x_2 @ params["wk"].T).reshape(B, N1, num_heads, hd).transpose(0, 2, 1, 3)
    v = (x_3 @ params["wv"].T).reshape(B, N1, num_heads, hd).transpose(0, 2, 1, 3)
    attn = jax.nn.softmax(jnp.einsum("bhnd,bhmd->bhnm", q, k) * scale, axis=-1)
    o = jnp.einsum("bhnm,bhmd->bhnd", attn, v).transpose(0, 2, 1, 3).reshape(B, N, C)
    return o @ params["wp"].T + params["bp"]


if __name__ == "__main__":
    # Small shapes consistent with the module: dim=32, num_heads=8 -> head_dim=4.
    B, N, N1, C, H = 2, 8, 6, 32, 8

    key = jax.random.PRNGKey(0)
    ks = jax.random.split(key, 8)
    params = {
        "wq": jax.random.normal(ks[0], (C, C), jnp.float32) * 0.05,
        "wk": jax.random.normal(ks[1], (C, C), jnp.float32) * 0.05,
        "wv": jax.random.normal(ks[2], (C, C), jnp.float32) * 0.05,
        "wp": jax.random.normal(ks[3], (C, C), jnp.float32) * 0.05,
        "bp": jax.random.normal(ks[4], (C,), jnp.float32) * 0.05,
    }
    x_1 = jax.random.normal(ks[5], (B, N, C), jnp.float32)
    x_2 = jax.random.normal(ks[6], (B, N1, C), jnp.float32)
    x_3 = jax.random.normal(ks[7], (B, N1, C), jnp.float32)

    out = cross_attention_forward(x_1, x_2, x_3, params, H)
    out = jax.block_until_ready(out)

    ref = reference_forward(x_1, x_2, x_3, params, H)
    assert out.shape == (B, N, C)
    # Tolerance accounts for intentional bf16 MXU operands (f32 accumulation);
    # the softmax divide itself is exact f32.
    assert jnp.allclose(out, ref, atol=2e-2, rtol=2e-2), "mismatch vs reference"

    print("KERNEL_OK")
</pallas_src>

<mosaic_0001>
module attributes {stable_mosaic.version = 11 : i64} {
  func.func @_cross_attn_kernel(%arg0: i32, %arg1: memref<16x32xf32, #tpu.memory_space<vmem>>, %arg2: memref<12x32xf32, #tpu.memory_space<vmem>>, %arg3: memref<12x32xf32, #tpu.memory_space<vmem>>, %arg4: memref<32x32xbf16, #tpu.memory_space<vmem>>, %arg5: memref<32x32xbf16, #tpu.memory_space<vmem>>, %arg6: memref<32x32xbf16, #tpu.memory_space<vmem>>, %arg7: memref<32x32xbf16, #tpu.memory_space<vmem>>, %arg8: memref<1x32xf32, #tpu.memory_space<vmem>>, %arg9: memref<48x32xbf16, #tpu.memory_space<vmem>>, %arg10: memref<16x32xf32, #tpu.memory_space<vmem>>) attributes {dimension_semantics = [#tpu.dimension_semantics<parallel>], iteration_bounds = array<i64: 1>, scalar_prefetch = 0 : i64, scratch_operands = 0 : i64, tpu.core_type = #tpu.core_type<tc>, window_params = [{transform_indices = @transform_0, window_bounds = array<i64: 16, 32>}, {transform_indices = @transform_1, window_bounds = array<i64: 12, 32>}, {transform_indices = @transform_2, window_bounds = array<i64: 12, 32>}, {pipeline_mode = #tpu.pipeline_mode<synchronous>, transform_indices = @transform_3, window_bounds = array<i64: 32, 32>}, {pipeline_mode = #tpu.pipeline_mode<synchronous>, transform_indices = @transform_4, window_bounds = array<i64: 32, 32>}, {pipeline_mode = #tpu.pipeline_mode<synchronous>, transform_indices = @transform_5, window_bounds = array<i64: 32, 32>}, {pipeline_mode = #tpu.pipeline_mode<synchronous>, transform_indices = @transform_6, window_bounds = array<i64: 32, 32>}, {pipeline_mode = #tpu.pipeline_mode<synchronous>, transform_indices = @transform_7, window_bounds = array<i64: 1, 32>}, {pipeline_mode = #tpu.pipeline_mode<synchronous>, transform_indices = @transform_8, window_bounds = array<i64: 48, 32>}, {transform_indices = @transform_9, window_bounds = array<i64: 16, 32>}]} {
    %c0 = arith.constant 0 : index
    %c0_0 = arith.constant 0 : index
    %0 = vector.load %arg1[%c0, %c0_0] : memref<16x32xf32, #tpu.memory_space<vmem>>, vector<16x32xf32>
    %1 = arith.truncf %0 : vector<16x32xf32> to vector<16x32xbf16>
    %c0_1 = arith.constant 0 : index
    %c0_2 = arith.constant 0 : index
    %2 = vector.load %arg2[%c0_1, %c0_2] : memref<12x32xf32, #tpu.memory_space<vmem>>, vector<12x32xf32>
    %3 = arith.truncf %2 : vector<12x32xf32> to vector<12x32xbf16>
    %c0_3 = arith.constant 0 : index
    %c0_4 = arith.constant 0 : index
    %4 = vector.load %arg3[%c0_3, %c0_4] : memref<12x32xf32, #tpu.memory_space<vmem>>, vector<12x32xf32>
    %5 = arith.truncf %4 : vector<12x32xf32> to vector<12x32xbf16>
    %c0_5 = arith.constant 0 : index
    %c0_6 = arith.constant 0 : index
    %6 = vector.load %arg4[%c0_5, %c0_6] : memref<32x32xbf16, #tpu.memory_space<vmem>>, vector<32x32xbf16>
    %cst = arith.constant dense<0.000000e+00> : vector<16x32xf32>
    %7 = tpu.matmul %1, %6, %cst {dimension_numbers = #tpu.dot_dimension_numbers<[1], [0], [0], [1], [0, 0, 1, 1], [], []>} : vector<16x32xbf16>, vector<32x32xbf16>, vector<16x32xf32> -> vector<16x32xf32>
    %c0_7 = arith.constant 0 : index
    %c0_8 = arith.constant 0 : index
    %8 = vector.load %arg5[%c0_7, %c0_8] : memref<32x32xbf16, #tpu.memory_space<vmem>>, vector<32x32xbf16>
    %cst_9 = arith.constant dense<0.000000e+00> : vector<12x32xf32>
    %9 = tpu.matmul %3, %8, %cst_9 {dimension_numbers = #tpu.dot_dimension_numbers<[1], [0], [0], [1], [0, 0, 1, 1], [], []>} : vector<12x32xbf16>, vector<32x32xbf16>, vector<12x32xf32> -> vector<12x32xf32>
    %c0_10 = arith.constant 0 : index
    %c0_11 = arith.constant 0 : index
    %10 = vector.load %arg6[%c0_10, %c0_11] : memref<32x32xbf16, #tpu.memory_space<vmem>>, vector<32x32xbf16>
    %cst_12 = arith.constant dense<0.000000e+00> : vector<12x32xf32>
    %11 = tpu.matmul %5, %10, %cst_12 {dimension_numbers = #tpu.dot_dimension_numbers<[1], [0], [0], [1], [0, 0, 1, 1], [], []>} : vector<12x32xbf16>, vector<32x32xbf16>, vector<12x32xf32> -> vector<12x32xf32>
    %12 = arith.truncf %7 : vector<16x32xf32> to vector<16x32xbf16>
    %13 = arith.truncf %9 : vector<12x32xf32> to vector<12x32xbf16>
    %14 = arith.truncf %11 : vector<12x32xf32> to vector<12x32xbf16>
    %c0_13 = arith.constant 0 : index
    %c0_14 = arith.constant 0 : index
    %15 = vector.load %arg9[%c0_13, %c0_14] : memref<48x32xbf16, #tpu.memory_space<vmem>>, vector<48x32xbf16>
    %16 = vector.extract_strided_slice %12 {offsets = [0, 0], sizes = [8, 32], strides = [1, 1]} : vector<16x32xbf16> to vector<8x32xbf16>
    %17 = vector.extract_strided_slice %13 {offsets = [0, 0], sizes = [6, 32], strides = [1, 1]} : vector<12x32xbf16> to vector<6x32xbf16>
    %18 = vector.extract_strided_slice %14 {offsets = [0, 0], sizes = [6, 32], strides = [1, 1]} : vector<12x32xbf16> to vector<6x32xbf16>
    %19 = tpu.concatenate %17, %17, %17, %17, %17, %17, %17, %17 in 0 : vector<6x32xbf16>, vector<6x32xbf16>, vector<6x32xbf16>, vector<6x32xbf16>, vector<6x32xbf16>, vector<6x32xbf16>, vector<6x32xbf16>, vector<6x32xbf16> -> vector<48x32xbf16>
    %20 = arith.mulf %19, %15 : vector<48x32xbf16>
    %21 = tpu.concatenate %18, %18, %18, %18, %18, %18, %18, %18 in 0 : vector<6x32xbf16>, vector<6x32xbf16>, vector<6x32xbf16>, vector<6x32xbf16>, vector<6x32xbf16>, vector<6x32xbf16>, vector<6x32xbf16>, vector<6x32xbf16> -> vector<48x32xbf16>
    %22 = arith.mulf %21, %15 : vector<48x32xbf16>
    %cst_15 = arith.constant dense<0.000000e+00> : vector<8x48xf32>
    %23 = tpu.matmul %16, %20, %cst_15 {dimension_numbers = #tpu.dot_dimension_numbers<[1], [1], [0], [0], [0, 0, 1, 0], [], []>} : vector<8x32xbf16>, vector<48x32xbf16>, vector<8x48xf32> -> vector<8x48xf32>
    %cst_16 = arith.constant dense<0xFF800000> : vector<8xf32>
    %24 = vector.multi_reduction <maximumf>, %23, %cst_16 [1] : vector<8x48xf32> to vector<8xf32>
    %25 = vector.shape_cast %24 : vector<8xf32> to vector<8x1xf32>
    %26 = vector.broadcast %25 : vector<8x1xf32> to vector<8x48xf32>
    %27 = arith.subf %23, %26 : vector<8x48xf32>
    %28 = math.exp %27 : vector<8x48xf32>
    %29 = arith.truncf %28 : vector<8x48xf32> to vector<8x48xbf16>
    %cst_17 = arith.constant dense<0.000000e+00> : vector<8x32xf32>
    %30 = tpu.matmul %29, %22, %cst_17 {dimension_numbers = #tpu.dot_dimension_numbers<[1], [0], [0], [1], [0, 0, 1, 1], [], []>} : vector<8x48xbf16>, vector<48x32xbf16>, vector<8x32xf32> -> vector<8x32xf32>
    %cst_18 = arith.constant dense<0.000000e+00> : vector<8x32xf32>
    %31 = tpu.matmul %29, %15, %cst_18 {dimension_numbers = #tpu.dot_dimension_numbers<[1], [0], [0], [1], [0, 0, 1, 1], [], []>} : vector<8x48xbf16>, vector<48x32xbf16>, vector<8x32xf32> -> vector<8x32xf32>
    %32 = arith.divf %30, %31 : vector<8x32xf32>
    %33 = vector.extract_strided_slice %12 {offsets = [8, 0], sizes = [8, 32], strides = [1, 1]} : vector<16x32xbf16> to vector<8x32xbf16>
    %34 = vector.extract_strided_slice %13 {offsets = [6, 0], sizes = [6, 32], strides = [1, 1]} : vector<12x32xbf16> to vector<6x32xbf16>
    %35 = vector.extract_strided_slice %14 {offsets = [6, 0], sizes = [6, 32], strides = [1, 1]} : vector<12x32xbf16> to vector<6x32xbf16>
    %36 = tpu.concatenate %34, %34, %34, %34, %34, %34, %34, %34 in 0 : vector<6x32xbf16>, vector<6x32xbf16>, vector<6x32xbf16>, vector<6x32xbf16>, vector<6x32xbf16>, vector<6x32xbf16>, vector<6x32xbf16>, vector<6x32xbf16> -> vector<48x32xbf16>
    %37 = arith.mulf %36, %15 : vector<48x32xbf16>
    %38 = tpu.concatenate %35, %35, %35, %35, %35, %35, %35, %35 in 0 : vector<6x32xbf16>, vector<6x32xbf16>, vector<6x32xbf16>, vector<6x32xbf16>, vector<6x32xbf16>, vector<6x32xbf16>, vector<6x32xbf16>, vector<6x32xbf16> -> vector<48x32xbf16>
    %39 = arith.mulf %38, %15 : vector<48x32xbf16>
    %cst_19 = arith.constant dense<0.000000e+00> : vector<8x48xf32>
    %40 = tpu.matmul %33, %37, %cst_19 {dimension_numbers = #tpu.dot_dimension_numbers<[1], [1], [0], [0], [0, 0, 1, 0], [], []>} : vector<8x32xbf16>, vector<48x32xbf16>, vector<8x48xf32> -> vector<8x48xf32>
    %cst_20 = arith.constant dense<0xFF800000> : vector<8xf32>
    %41 = vector.multi_reduction <maximumf>, %40, %cst_20 [1] : vector<8x48xf32> to vector<8xf32>
    %42 = vector.shape_cast %41 : vector<8xf32> to vector<8x1xf32>
    %43 = vector.broadcast %42 : vector<8x1xf32> to vector<8x48xf32>
    %44 = arith.subf %40, %43 : vector<8x48xf32>
    %45 = math.exp %44 : vector<8x48xf32>
    %46 = arith.truncf %45 : vector<8x48xf32> to vector<8x48xbf16>
    %cst_21 = arith.constant dense<0.000000e+00> : vector<8x32xf32>
    %47 = tpu.matmul %46, %39, %cst_21 {dimension_numbers = #tpu.dot_dimension_numbers<[1], [0], [0], [1], [0, 0, 1, 1], [], []>} : vector<8x48xbf16>, vector<48x32xbf16>, vector<8x32xf32> -> vector<8x32xf32>
    %cst_22 = arith.constant dense<0.000000e+00> : vector<8x32xf32>
    %48 = tpu.matmul %46, %15, %cst_22 {dimension_numbers = #tpu.dot_dimension_numbers<[1], [0], [0], [1], [0, 0, 1, 1], [], []>} : vector<8x48xbf16>, vector<48x32xbf16>, vector<8x32xf32> -> vector<8x32xf32>
    %49 = arith.divf %47, %48 : vector<8x32xf32>
    %50 = tpu.concatenate %32, %49 in 0 : vector<8x32xf32>, vector<8x32xf32> -> vector<16x32xf32>
    %51 = arith.truncf %50 : vector<16x32xf32> to vector<16x32xbf16>
    %c0_23 = arith.constant 0 : index
    %c0_24 = arith.constant 0 : index
    %52 = vector.load %arg7[%c0_23, %c0_24] : memref<32x32xbf16, #tpu.memory_space<vmem>>, vector<32x32xbf16>
    %cst_25 = arith.constant dense<0.000000e+00> : vector<16x32xf32>
    %53 = tpu.matmul %51, %52, %cst_25 {dimension_numbers = #tpu.dot_dimension_numbers<[1], [0], [0], [1], [0, 0, 1, 1], [], []>} : vector<16x32xbf16>, vector<32x32xbf16>, vector<16x32xf32> -> vector<16x32xf32>
    %c0_26 = arith.constant 0 : index
    %c0_27 = arith.constant 0 : index
    %54 = vector.load %arg8[%c0_26, %c0_27] : memref<1x32xf32, #tpu.memory_space<vmem>>, vector<1x32xf32>
    %55 = vector.broadcast %54 : vector<1x32xf32> to vector<16x32xf32>
    %56 = arith.addf %53, %55 : vector<16x32xf32>
    %c0_28 = arith.constant 0 : index
    %c0_29 = arith.constant 0 : index
    %57 = vector.load %arg10[%c0_28, %c0_29] : memref<16x32xf32, #tpu.memory_space<vmem>>, vector<16x32xf32>
    tpu.vector_store %arg10[%c0_28, %c0_29], %56 {strides = array<i32>} : memref<16x32xf32, #tpu.memory_space<vmem>>, vector<16x32xf32>,
    return
  }
  func.func @transform_0(%arg0: i32) -> (i32, i32) {
    %c0_i32 = arith.constant 0 : i32
    %c0_i32_0 = arith.constant 0 : i32
    return %arg0, %c0_i32 : i32, i32
  }
  func.func @transform_1(%arg0: i32) -> (i32, i32) {
    %c0_i32 = arith.constant 0 : i32
    %c0_i32_0 = arith.constant 0 : i32
    return %arg0, %c0_i32 : i32, i32
  }
  func.func @transform_2(%arg0: i32) -> (i32, i32) {
    %c0_i32 = arith.constant 0 : i32
    %c0_i32_0 = arith.constant 0 : i32
    return %arg0, %c0_i32 : i32, i32
  }
  func.func @transform_3(%arg0: i32) -> (i32, i32) {
    %c0_i32 = arith.constant 0 : i32
    %c0_i32_0 = arith.constant 0 : i32
    %c0_i32_1 = arith.constant 0 : i32
    return %c0_i32, %c0_i32_0 : i32, i32
  }
  func.func @transform_4(%arg0: i32) -> (i32, i32) {
    %c0_i32 = arith.constant 0 : i32
    %c0_i32_0 = arith.constant 0 : i32
    %c0_i32_1 = arith.constant 0 : i32
    return %c0_i32, %c0_i32_0 : i32, i32
  }
  func.func @transform_5(%arg0: i32) -> (i32, i32) {
    %c0_i32 = arith.constant 0 : i32
    %c0_i32_0 = arith.constant 0 : i32
    %c0_i32_1 = arith.constant 0 : i32
    return %c0_i32, %c0_i32_0 : i32, i32
  }
  func.func @transform_6(%arg0: i32) -> (i32, i32) {
    %c0_i32 = arith.constant 0 : i32
    %c0_i32_0 = arith.constant 0 : i32
    %c0_i32_1 = arith.constant 0 : i32
    return %c0_i32, %c0_i32_0 : i32, i32
  }
  func.func @transform_7(%arg0: i32) -> (i32, i32) {
    %c0_i32 = arith.constant 0 : i32
    %c0_i32_0 = arith.constant 0 : i32
    %c0_i32_1 = arith.constant 0 : i32
    return %c0_i32, %c0_i32_0 : i32, i32
  }
  func.func @transform_8(%arg0: i32) -> (i32, i32) {
    %c0_i32 = arith.constant 0 : i32
    %c0_i32_0 = arith.constant 0 : i32
    %c0_i32_1 = arith.constant 0 : i32
    return %c0_i32, %c0_i32_0 : i32, i32
  }
  func.func @transform_9(%arg0: i32) -> (i32, i32) {
    %c0_i32 = arith.constant 0 : i32
    %c0_i32_0 = arith.constant 0 : i32
    return %arg0, %c0_i32 : i32, i32
  }
}

</mosaic_0001>

<llo_original>
// kernel: tpu_custom_call.1
$region0: #{tpu_custom_call.1}
  #allocation0 [shape = 'u32[]', space=smem, size = 0x4, offset = 0x4, fixed_abs, tag = 'smem constant byte address 0x4 - core index']
  #allocation1 [shape = 'u32[144,128]{1,0:T(1,128)}', space=vmem, size = 0x12000, scoped, tag = 'internal scratch']
  %s0 = inlined_call_operand.vmem [shape: f32[16,32], index: 0, kind: input, shape index: {}]
  %s1 = inlined_call_operand.vmem [shape: f32[12,32], index: 1, kind: input, shape index: {}]
  %s2 = inlined_call_operand.hbm [shape: f32[12,32], index: 2, kind: input, shape index: {}]
  %s3 = inlined_call_operand.vmem [shape: bf16[32,32], index: 3, kind: input, shape index: {}]
  %s4 = inlined_call_operand.hbm [shape: bf16[32,32], index: 4, kind: input, shape index: {}]
  %s5 = inlined_call_operand.hbm [shape: bf16[32,32], index: 5, kind: input, shape index: {}]
  %s6 = inlined_call_operand.hbm [shape: bf16[32,32], index: 6, kind: input, shape index: {}]
  %s7 = inlined_call_operand.vmem [shape: f32[1,32], index: 7, kind: input, shape index: {}]
  %s8 = inlined_call_operand.vmem [shape: bf16[48,32], index: 8, kind: input, shape index: {}]
  %s9 = inlined_call_operand.hbm [shape: f32[16,32], index: 9, kind: output, shape index: {}]
  %s10 = sld [smem:[#allocation0]]
  $region62: #{tpu_custom_call.1} parent=0
    _
  %s12 = ssub.s32 1, %s10
  %s13 = scalar_select 0, %s12, %s10
  $region1: #{tpu_custom_call.1} parent=0
    #allocation2 [shape = 'u8[8192]{0}', space=vmem, size = 0x2000, scoped, tag = 'input window, operand 2, single buffered']
    #allocation3 [shape = 's32[1]{0}', space=sflag, size = 0x4, scoped, tag = 'scoped memory for tpu_custom_call.1']
    #allocation4 [shape = 's32[1]{0}', space=sflag, size = 0x4, scoped, tag = 'scoped memory for tpu_custom_call.1']
    #allocation5 [shape = 'u8[8192]{0}', space=vmem, size = 0x2000, scoped, tag = 'input window, operand 4, single buffered']
    #allocation6 [shape = 's32[1]{0}', space=sflag, size = 0x4, scoped, tag = 'scoped memory for tpu_custom_call.1']
    #allocation7 [shape = 'u8[8192]{0}', space=vmem, size = 0x2000, scoped, tag = 'input window, operand 5, single buffered']
    #allocation8 [shape = 'u8[8192]{0}', space=vmem, size = 0x2000, scoped, tag = 'input window, operand 6, single buffered']
    #allocation9 [shape = 's32[1]{0}', space=sflag, size = 0x4, scoped, tag = 'scoped memory for tpu_custom_call.1']
    #allocation10 [shape = 'u8[8192]{0}', space=vmem, size = 0x2000, scoped, tag = 'output window, operand 0, single buffered']
    %14 = vsyncpa [#allocation3], 0
    %15 = vsyncpa [#allocation6], 0
    %16 = vsyncpa [#allocation9], 0
    %17 = vsyncpa [#allocation4], 0
    // Predicated region
    $region2: #{tpu_custom_call.1} parent=1 // pred_check
      _
    $region3: #{tpu_custom_call.1} parent=1 // pred_check_branch
      %19 = sbr.rel (0) target = $region5
    $region4: #{tpu_custom_call.1} parent=1 // pred_region
      _
    $region5: #{tpu_custom_call.1} parent=1 // pred_fallthru
      _
    // Predicated region
    $region6: #{tpu_custom_call.1} parent=1 // pred_check
      _
    $region7: #{tpu_custom_call.1} parent=1 // pred_check_branch
      %21 = sbr.rel (0) target = $region9
    $region8: #{tpu_custom_call.1} parent=1 // pred_region
      _
    $region9: #{tpu_custom_call.1} parent=1 // pred_fallthru
      _
    // Predicated region
    $region10: #{tpu_custom_call.1} parent=1 // pred_check
      _
    $region11: #{tpu_custom_call.1} parent=1 // pred_check_branch
      %23 = sbr.rel (0) target = $region13
    $region12: #{tpu_custom_call.1} parent=1 // pred_region
      %s25 = ssub.s32 256, 256
      %26 = vsyncadd [#allocation3], %s25
      %s27 = sshll.u32 [#allocation2], 4
      %s28 = int_to_ptr.vmem [resolvable:$true] %s27
      %33 = dma.hbm_to_vmem [thread:$0]  %s2, 256, %s28, [#allocation3], 128, 128, 8
    $region13: #{tpu_custom_call.1} parent=1 // pred_fallthru
      _
    // Predicated region
    $region14: #{tpu_custom_call.1} parent=1 // pred_check
      _
    $region15: #{tpu_custom_call.1} parent=1 // pred_check_branch
      %35 = sbr.rel (0) target = $region17
    $region16: #{tpu_custom_call.1} parent=1 // pred_region
      _
    $region17: #{tpu_custom_call.1} parent=1 // pred_fallthru
      _
    // Predicated region
    $region18: #{tpu_custom_call.1} parent=1 // pred_check
      _
    $region19: #{tpu_custom_call.1} parent=1 // pred_check_branch
      %37 = sbr.rel (0) target = $region21
    $region20: #{tpu_custom_call.1} parent=1 // pred_region
      %s39 = ssub.s32 256, 256
      %40 = vsyncadd [#allocation6], %s39
      %s41 = sshll.u32 [#allocation5], 4
      %s42 = int_to_ptr.vmem [resolvable:$true] %s41
      %47 = dma.hbm_to_vmem [thread:$0]  %s4, 256, %s42, [#allocation6], 64, 64, 4
    $region21: #{tpu_custom_call.1} parent=1 // pred_fallthru
      _
    // Predicated region
    $region22: #{tpu_custom_call.1} parent=1 // pred_check
      _
    $region23: #{tpu_custom_call.1} parent=1 // pred_check_branch
      %49 = sbr.rel (0) target = $region25
    $region24: #{tpu_custom_call.1} parent=1 // pred_region
      %s51 = ssub.s32 256, 256
      %52 = vsyncadd [#allocation6], %s51
      %s53 = sshll.u32 [#allocation7], 4
      %s54 = int_to_ptr.vmem [resolvable:$true] %s53
      %59 = dma.hbm_to_vmem [thread:$0]  %s5, 256, %s54, [#allocation6], 64, 64, 4
    $region25: #{tpu_custom_call.1} parent=1 // pred_fallthru
      _
    // Predicated region
    $region26: #{tpu_custom_call.1} parent=1 // pred_check
      _
    $region27: #{tpu_custom_call.1} parent=1 // pred_check_branch
      %61 = sbr.rel (0) target = $region29
    $region28: #{tpu_custom_call.1} parent=1 // pred_region
      %s63 = ssub.s32 256, 256
      %64 = vsyncadd [#allocation9], %s63
      %s65 = sshll.u32 [#allocation8], 4
      %s66 = int_to_ptr.vmem [resolvable:$true] %s65
      %71 = dma.hbm_to_vmem [thread:$0]  %s6, 256, %s66, [#allocation9], 64, 64, 4
    $region29: #{tpu_custom_call.1} parent=1 // pred_fallthru
      _
    // Predicated region
    $region30: #{tpu_custom_call.1} parent=1 // pred_check
      _
    $region31: #{tpu_custom_call.1} parent=1 // pred_check_branch
      %73 = sbr.rel (0) target = $region33
    $region32: #{tpu_custom_call.1} parent=1 // pred_region
      _
    $region33: #{tpu_custom_call.1} parent=1 // pred_fallthru
      _
    // Predicated region
    $region34: #{tpu_custom_call.1} parent=1 // pred_check
      _
    $region35: #{tpu_custom_call.1} parent=1 // pred_check_branch
      %75 = sbr.rel (0) target = $region37
    $region36: #{tpu_custom_call.1} parent=1 // pred_region
      _
    $region37: #{tpu_custom_call.1} parent=1 // pred_fallthru
      _
    // Predicated region
    $region38: #{tpu_custom_call.1} parent=1 // pred_check
      _
    $region39: #{tpu_custom_call.1} parent=1 // pred_check_branch
      %77 = sbr.rel (0) target = $region41
    $region40: #{tpu_custom_call.1} parent=1 // pred_region
      %78 = dma.done [#allocation3], 256
    $region41: #{tpu_custom_call.1} parent=1 // pred_fallthru
      _
    // Predicated region
    $region42: #{tpu_custom_call.1} parent=1 // pred_check
      _
    $region43: #{tpu_custom_call.1} parent=1 // pred_check_branch
      %80 = sbr.rel (0) target = $region45
    $region44: #{tpu_custom_call.1} parent=1 // pred_region
      %81 = dma.done [#allocation6], 256
    $region45: #{tpu_custom_call.1} parent=1 // pred_fallthru
      _
    // Predicated region
    $region46: #{tpu_custom_call.1} parent=1 // pred_check
      _
    $region47: #{tpu_custom_call.1} parent=1 // pred_check_branch
      %83 = sbr.rel (0) target = $region49
    $region48: #{tpu_custom_call.1} parent=1 // pred_region
      %84 = dma.done [#allocation6], 256
    $region49: #{tpu_custom_call.1} parent=1 // pred_fallthru
      _
    // Predicated region
    $region50: #{tpu_custom_call.1} parent=1 // pred_check
      _
    $region51: #{tpu_custom_call.1} parent=1 // pred_check_branch
      %86 = sbr.rel (0) target = $region53
    $region52: #{tpu_custom_call.1} parent=1 // pred_region
      %87 = dma.done [#allocation9], 256
    $region53: #{tpu_custom_call.1} parent=1 // pred_fallthru
      _
    %v89 = vld [vmem:[%s0] sm:$0xff]
    %v90 = vld [vmem:[%s0 + $0x8] sm:$0xff]
    %v91 = vpack.c.bf16 %v90, %v89
    %v92 = vld [vmem:[%s1] sm:$0xff]
    %v93 = vld [vmem:[%s1 + $0x8] sm:$0xf]
    %v94 = vpack.c.bf16 %v93, %v92
    %v95 = vld [vmem:[#allocation2] sm:$0xff]
    %v96 = vld [vmem:[#allocation2 + $0x8] sm:$0xf]
    %v97 = vpack.c.bf16 %v96, %v95
    %v98 = vld [vmem:[%s3] sm:$0xf]
    %v99 = vld [vmem:[%s3 + $0x4] sm:$0xf]
    %v100 = vld [vmem:[%s3 + $0x8] sm:$0xf]
    %v101 = vld [vmem:[%s3 + $0xc] sm:$0xf]
    %v106 = vunpack.c.l.b16 %v98
    %v107 = vunpack.c.l.b16 %v99
    %v108 = vunpack.c.l.b16 %v100
    %v109 = vunpack.c.l.b16 %v101
    %v110 = vpack.c.b16 %v107, %v106
    %v111 = vpack.c.b16 %v109, %v108
    %vm114 = vcmask 261120
    %v116 = vsel %vm114, %v91, 0
    %118 = vmatprep.subr.bf16.mxu0 0
    %119 = vmatpush1.bf16.msra.mxu0 %v110
    %120 = vmatprep.subr.bf16.mxu0 0
    %121 = vmatpush1.bf16.msra.mxu0 %v111
    %122 = vmatprep.subr.bf16.mxu0 0
    %123 = vmatpush1.bf16.msra.mxu0 0
    %124 = vmatprep.subr.bf16.mxu0 0
    %125 = vmatpush1.bf16.msra.mxu0 0
    %126 = vmatprep.subr.bf16.mxu0 0
    %127 = vmatpush1.bf16.msra.mxu0 0
    %128 = vmatprep.subr.bf16.mxu0 0
    %129 = vmatpush1.bf16.msra.mxu0 0
    %130 = vmatprep.subr.bf16.mxu0 0
    %131 = vmatpush1.bf16.msra.mxu0 0
    %132 = vmatprep.subr.bf16.mxu0 0
    %133 = vmatpush1.bf16.msra.mxu0 0
    %134 = vmatprep.subr.bf16.mxu0 0
    %135 = vmatpush1.bf16.msra.mxu0 0
    %136 = vmatprep.subr.bf16.mxu0 0
    %137 = vmatpush1.bf16.msra.mxu0 0
    %138 = vmatprep.subr.bf16.mxu0 0
    %139 = vmatpush1.bf16.msra.mxu0 0
    %140 = vmatprep.subr.bf16.mxu0 0
    %141 = vmatpush1.bf16.msra.mxu0 0
    %142 = vmatprep.subr.bf16.mxu0 0
    %143 = vmatpush1.bf16.msra.mxu0 0
    %144 = vmatprep.subr.bf16.mxu0 0
    %145 = vmatpush1.bf16.msra.mxu0 0
    %146 = vmatprep.subr.bf16.mxu0 0
    %147 = vmatpush1.bf16.msra.mxu0 0
    %148 = vmatprep.subr.bf16.mxu0 0
    %149 = vmatpush1.bf16.msra.mxu0 0
    %150 = vmatprep.mubr.bf16.mxu0 0
    %151 = vmatmul.mubr.bf16.gmra.mrb[0].mxu0 %v116
    %v152 = vpop.f32.mrb[0].mxu0
    %v153 = vadd.f32 0.0, %v152
    %v154 = vpop.f32.mrb[0].mxu0
    %v155 = vpop.f32.mrb[0].mxu0
    %v156 = vadd.f32 0.0, %v155
    %v157 = vpop.f32.mrb[0].mxu0
    %158 = vdwg.mxu0
    %v159 = vld [vmem:[#allocation5] sm:$0xf]
    %v160 = vld [vmem:[#allocation5 + $0x4] sm:$0xf]
    %v161 = vld [vmem:[#allocation5 + $0x8] sm:$0xf]
    %v162 = vld [vmem:[#allocation5 + $0xc] sm:$0xf]
    %v167 = vunpack.c.l.b16 %v159
    %v168 = vunpack.c.l.b16 %v160
    %v169 = vunpack.c.l.b16 %v161
    %v170 = vunpack.c.l.b16 %v162
    %v171 = vpack.c.b16 %v168, %v167
    %v172 = vpack.c.b16 %v170, %v169
    %v176 = vsel %vm114, %v94, 0
    %178 = vmatprep.subr.bf16.mxu0 0
    %179 = vmatpush1.bf16.msra.mxu0 %v171
    %180 = vmatprep.subr.bf16.mxu0 0
    %181 = vmatpush1.bf16.msra.mxu0 %v172
    %182 = vmatprep.subr.bf16.mxu0 0
    %183 = vmatpush1.bf16.msra.mxu0 0
    %184 = vmatprep.subr.bf16.mxu0 0
    %185 = vmatpush1.bf16.msra.mxu0 0
    %186 = vmatprep.subr.bf16.mxu0 0
    %187 = vmatpush1.bf16.msra.mxu0 0
    %188 = vmatprep.subr.bf16.mxu0 0
    %189 = vmatpush1.bf16.msra.mxu0 0
    %190 = vmatprep.subr.bf16.mxu0 0
    %191 = vmatpush1.bf16.msra.mxu0 0
    %192 = vmatprep.subr.bf16.mxu0 0
    %193 = vmatpush1.bf16.msra.mxu0 0
    %194 = vmatprep.subr.bf16.mxu0 0
    %195 = vmatpush1.bf16.msra.mxu0 0
    %196 = vmatprep.subr.bf16.mxu0 0
    %197 = vmatpush1.bf16.msra.mxu0 0
    %198 = vmatprep.subr.bf16.mxu0 0
    %199 = vmatpush1.bf16.msra.mxu0 0
    %200 = vmatprep.subr.bf16.mxu0 0
    %201 = vmatpush1.bf16.msra.mxu0 0
    %202 = vmatprep.subr.bf16.mxu0 0
    %203 = vmatpush1.bf16.msra.mxu0 0
    %204 = vmatprep.subr.bf16.mxu0 0
    %205 = vmatpush1.bf16.msra.mxu0 0
    %206 = vmatprep.subr.bf16.mxu0 0
    %207 = vmatpush1.bf16.msra.mxu0 0
    %208 = vmatprep.subr.bf16.mxu0 0
    %209 = vmatpush1.bf16.msra.mxu0 0
    %210 = vmatprep.mubr.bf16.mxu0 0
    %211 = vmatmul.mubr.bf16.gmra.mrb[0].mxu0 %v176
    %v212 = vpop.f32.mrb[0].mxu0
    %v213 = vadd.f32 0.0, %v212
    %v214 = vpop.f32.mrb[0].mxu0
    %v215 = vpop.f32.mrb[0].mxu0
    %v216 = vadd.f32 0.0, %v215
    %v217 = vpop.f32.mrb[0].mxu0
    %218 = vdwg.mxu0
    %v219 = vld [vmem:[#allocation7] sm:$0xf]
    %v220 = vld [vmem:[#allocation7 + $0x4] sm:$0xf]
    %v221 = vld [vmem:[#allocation7 + $0x8] sm:$0xf]
    %v222 = vld [vmem:[#allocation7 + $0xc] sm:$0xf]
    %v227 = vunpack.c.l.b16 %v219
    %v228 = vunpack.c.l.b16 %v220
    %v229 = vunpack.c.l.b16 %v221
    %v230 = vunpack.c.l.b16 %v222
    %v231 = vpack.c.b16 %v228, %v227
    %v232 = vpack.c.b16 %v230, %v229
    %v236 = vsel %vm114, %v97, 0
    %238 = vmatprep.subr.bf16.mxu0 0
    %239 = vmatpush1.bf16.msra.mxu0 %v231
    %240 = vmatprep.subr.bf16.mxu0 0
    %241 = vmatpush1.bf16.msra.mxu0 %v232
    %242 = vmatprep.subr.bf16.mxu0 0
    %243 = vmatpush1.bf16.msra.mxu0 0
    %244 = vmatprep.subr.bf16.mxu0 0
    %245 = vmatpush1.bf16.msra.mxu0 0
    %246 = vmatprep.subr.bf16.mxu0 0
    %247 = vmatpush1.bf16.msra.mxu0 0
    %248 = vmatprep.subr.bf16.mxu0 0
    %249 = vmatpush1.bf16.msra.mxu0 0
    %250 = vmatprep.subr.bf16.mxu0 0
    %251 = vmatpush1.bf16.msra.mxu0 0
    %252 = vmatprep.subr.bf16.mxu0 0
    %253 = vmatpush1.bf16.msra.mxu0 0
    %254 = vmatprep.subr.bf16.mxu0 0
    %255 = vmatpush1.bf16.msra.mxu0 0
    %256 = vmatprep.subr.bf16.mxu0 0
    %257 = vmatpush1.bf16.msra.mxu0 0
    %258 = vmatprep.subr.bf16.mxu0 0
    %259 = vmatpush1.bf16.msra.mxu0 0
    %260 = vmatprep.subr.bf16.mxu0 0
    %261 = vmatpush1.bf16.msra.mxu0 0
    %262 = vmatprep.subr.bf16.mxu0 0
    %263 = vmatpush1.bf16.msra.mxu0 0
    %264 = vmatprep.subr.bf16.mxu0 0
    %265 = vmatpush1.bf16.msra.mxu0 0
    %266 = vmatprep.subr.bf16.mxu0 0
    %267 = vmatpush1.bf16.msra.mxu0 0
    %268 = vmatprep.subr.bf16.mxu0 0
    %269 = vmatpush1.bf16.msra.mxu0 0
    %270 = vmatprep.mubr.bf16.mxu0 0
    %271 = vmatmul.mubr.bf16.gmra.mrb[0].mxu0 %v236
    %v272 = vpop.f32.mrb[0].mxu0
    %v273 = vadd.f32 0.0, %v272
    %v274 = vpop.f32.mrb[0].mxu0
    %v275 = vpop.f32.mrb[0].mxu0
    %v276 = vadd.f32 0.0, %v275
    %v277 = vpop.f32.mrb[0].mxu0
    %278 = vdwg.mxu0
    %v279 = vpack.c.bf16 %v156, %v153
    %v280 = vpack.c.bf16 %v216, %v213
    %v281 = vpack.c.bf16 %v276, %v273
    %v282 = vld [vmem:[%s8] sm:$0xf]
    %v283 = vld [vmem:[%s8 + $0x4] sm:$0xf]
    %v284 = vld [vmem:[%s8 + $0x8] sm:$0xf]
    %v285 = vld [vmem:[%s8 + $0xc] sm:$0xf]
    %v286 = vld [vmem:[%s8 + $0x10] sm:$0xf]
    %v287 = vld [vmem:[%s8 + $0x14] sm:$0xf]
    %v289 = vrot.slane %v280, 5
    %v290 = vrot.slane %v280, 2
    %v291 = vrot.slane %v280, 7
    %v292 = vrot.slane %v280, 4
    %v293 = vrot.slane %v280, 1
    %v294 = vrot.slane %v280, 6
    %v295 = vrot.slane %v280, 3
    %vm296 = vcmask 1042432
    %v299 = vsel %vm296, %v280, %v289
    %vm300 = vcmask 1045504
    %v302 = vsel %vm300, %v299, %v290
    %vm304 = vcmask 1040384
    %v306 = vsel %vm304, %v290, %v291
    %vm307 = vcmask 1043456
    %v309 = vsel %vm307, %v306, %v292
    %vm310 = vcmask 1046528
    %v312 = vsel %vm310, %v309, %v293
    %vm314 = vcmask 1041408
    %v316 = vsel %vm314, %v293, %v294
    %vm317 = vcmask 1044480
    %v319 = vsel %vm317, %v316, %v295
    %v327 = vunpack.c.l.b16 %v282
    %v328 = vunpack.c.l.b16 %v283
    %v329 = vunpack.c.l.b16 %v284
    %v330 = vunpack.c.l.b16 %v285
    %v331 = vunpack.c.l.b16 %v286
    %v332 = vunpack.c.l.b16 %v287
    %v333 = vpack.c.b16 %v328, %v327
    %v334 = vpack.c.b16 %v330, %v329
    %v335 = vpack.c.b16 %v332, %v331
    %v339 = vmul.bf16 %v302, %v333
    %v340 = vmul.bf16 %v312, %v334
    %v341 = vmul.bf16 %v319, %v335
    %v343 = vrot.slane %v281, 5
    %v344 = vrot.slane %v281, 2
    %v345 = vrot.slane %v281, 7
    %v346 = vrot.slane %v281, 4
    %v347 = vrot.slane %v281, 1
    %v348 = vrot.slane %v281, 6
    %v349 = vrot.slane %v281, 3
    %v352 = vsel %vm296, %v281, %v343
    %v354 = vsel %vm300, %v352, %v344
    %v357 = vsel %vm304, %v344, %v345
    %v359 = vsel %vm307, %v357, %v346
    %v361 = vsel %vm310, %v359, %v347
    %v364 = vsel %vm314, %v347, %v348
    %v366 = vsel %vm317, %v364, %v349
    %v368 = vmul.bf16 %v354, %v333
    %v369 = vmul.bf16 %v361, %v334
    %v370 = vmul.bf16 %v366, %v335
    %v372 = vsel %vm114, %v279, 0
    %v375 = vsel %vm114, %v339, 0
    %v378 = vsel %vm114, %v340, 0
    %v381 = vsel %vm114, %v341, 0
    %383 = vmatprep.subr.bf16.mxu0 0
    %384 = vmatpush1.bf16.xpose.msra.mxu0 %v375
    %385 = vmatprep.subr.bf16.mxu0 0
    %386 = vmatpush1.bf16.xpose.msra.mxu0 %v378
    %387 = vmatprep.subr.bf16.mxu0 0
    %388 = vmatpush1.bf16.xpose.msra.mxu0 %v381
    %389 = vmatprep.subr.bf16.mxu0 0
    %390 = vmatpush1.bf16.xpose.msra.mxu0 0
    %391 = vmatprep.subr.bf16.mxu0 0
    %392 = vmatpush1.bf16.xpose.msra.mxu0 0
    %393 = vmatprep.subr.bf16.mxu0 0
    %394 = vmatpush1.bf16.xpose.msra.mxu0 0
    %395 = vmatprep.subr.bf16.mxu0 0
    %396 = vmatpush1.bf16.xpose.msra.mxu0 0
    %397 = vmatprep.subr.bf16.mxu0 0
    %398 = vmatpush1.bf16.xpose.msra.mxu0 0
    %399 = vmatprep.subr.bf16.mxu0 0
    %400 = vmatpush1.bf16.xpose.msra.mxu0 0
    %401 = vmatprep.subr.bf16.mxu0 0
    %402 = vmatpush1.bf16.xpose.msra.mxu0 0
    %403 = vmatprep.subr.bf16.mxu0 0
    %404 = vmatpush1.bf16.xpose.msra.mxu0 0
    %405 = vmatprep.subr.bf16.mxu0 0
    %406 = vmatpush1.bf16.xpose.msra.mxu0 0
    %407 = vmatprep.subr.bf16.mxu0 0
    %408 = vmatpush1.bf16.xpose.msra.mxu0 0
    %409 = vmatprep.subr.bf16.mxu0 0
    %410 = vmatpush1.bf16.xpose.msra.mxu0 0
    %411 = vmatprep.subr.bf16.mxu0 0
    %412 = vmatpush1.bf16.xpose.msra.mxu0 0
    %413 = vmatprep.subr.bf16.mxu0 0
    %414 = vmatpush1.bf16.xpose.msra.mxu0 0
    %415 = vmatprep.mubr.bf16.mxu0 0
    %416 = vmatmul.mubr.bf16.gmra.mrb[0].mxu0 %v372
    %v417 = vpop.f32.mrb[0].mxu0
    %v418 = vadd.f32 0.0, %v417
    %v419 = vpop.f32.mrb[0].mxu0
    %v420 = vpop.f32.mrb[0].mxu0
    %v421 = vpop.f32.mrb[0].mxu0
    %422 = vdwg.mxu0
    %vm423 = vcmask 392192
    %v424 = vsel %vm423, %v418, -inf
    %425 = vmax.xlane.f32.xlu0 %v424
    %v426 = vpop.xlane.xlu0 %425
    %v427 = vsub.f32 %v418, %v426
    %v428 = vmul.f32 %v427, 1.442695
    %v429 = vpow.pop %v428
    %v430 = vpack.c.bf16 %v429, %v429
    %v432 = vsel %vm423, %v430, 0
    %434 = vmatprep.subr.bf16.mxu0 0
    %435 = vmatpush1.bf16.msra.mxu0 %v368
    %436 = vmatprep.subr.bf16.mxu0 0
    %437 = vmatpush1.bf16.msra.mxu0 %v369
    %438 = vmatprep.subr.bf16.mxu0 0
    %439 = vmatpush1.bf16.msra.mxu0 %v370
    %440 = vmatprep.subr.bf16.mxu0 0
    %441 = vmatpush1.bf16.msra.mxu0 0
    %442 = vmatprep.subr.bf16.mxu0 0
    %443 = vmatpush1.bf16.msra.mxu0 0
    %444 = vmatprep.subr.bf16.mxu0 0
    %445 = vmatpush1.bf16.msra.mxu0 0
    %446 = vmatprep.subr.bf16.mxu0 0
    %447 = vmatpush1.bf16.msra.mxu0 0
    %448 = vmatprep.subr.bf16.mxu0 0
    %449 = vmatpush1.bf16.msra.mxu0 0
    %450 = vmatprep.subr.bf16.mxu0 0
    %451 = vmatpush1.bf16.msra.mxu0 0
    %452 = vmatprep.subr.bf16.mxu0 0
    %453 = vmatpush1.bf16.msra.mxu0 0
    %454 = vmatprep.subr.bf16.mxu0 0
    %455 = vmatpush1.bf16.msra.mxu0 0
    %456 = vmatprep.subr.bf16.mxu0 0
    %457 = vmatpush1.bf16.msra.mxu0 0
    %458 = vmatprep.subr.bf16.mxu0 0
    %459 = vmatpush1.bf16.msra.mxu0 0
    %460 = vmatprep.subr.bf16.mxu0 0
    %461 = vmatpush1.bf16.msra.mxu0 0
    %462 = vmatprep.subr.bf16.mxu0 0
    %463 = vmatpush1.bf16.msra.mxu0 0
    %464 = vmatprep.subr.bf16.mxu0 0
    %465 = vmatpush1.bf16.msra.mxu0 0
    %466 = vmatprep.mubr.bf16.mxu0 0
    %467 = vmatmul.mubr.bf16.gmra.mrb[0].mxu0 %v432
    %v468 = vpop.f32.mrb[0].mxu0
    %v469 = vadd.f32 0.0, %v468
    %v470 = vpop.f32.mrb[0].mxu0
    %v471 = vpop.f32.mrb[0].mxu0
    %v472 = vpop.f32.mrb[0].mxu0
    %473 = vdwg.mxu0
    %474 = vmatprep.subr.bf16.mxu0 0
    %475 = vmatpush1.bf16.msra.mxu0 %v333
    %476 = vmatprep.subr.bf16.mxu0 0
    %477 = vmatpush1.bf16.msra.mxu0 %v334
    %478 = vmatprep.subr.bf16.mxu0 0
    %479 = vmatpush1.bf16.msra.mxu0 %v335
    %480 = vmatprep.subr.bf16.mxu0 0
    %481 = vmatpush1.bf16.msra.mxu0 0
    %482 = vmatprep.subr.bf16.mxu0 0
    %483 = vmatpush1.bf16.msra.mxu0 0
    %484 = vmatprep.subr.bf16.mxu0 0
    %485 = vmatpush1.bf16.msra.mxu0 0
    %486 = vmatprep.subr.bf16.mxu0 0
    %487 = vmatpush1.bf16.msra.mxu0 0
    %488 = vmatprep.subr.bf16.mxu0 0
    %489 = vmatpush1.bf16.msra.mxu0 0
    %490 = vmatprep.subr.bf16.mxu0 0
    %491 = vmatpush1.bf16.msra.mxu0 0
    %492 = vmatprep.subr.bf16.mxu0 0
    %493 = vmatpush1.bf16.msra.mxu0 0
    %494 = vmatprep.subr.bf16.mxu0 0
    %495 = vmatpush1.bf16.msra.mxu0 0
    %496 = vmatprep.subr.bf16.mxu0 0
    %497 = vmatpush1.bf16.msra.mxu0 0
    %498 = vmatprep.subr.bf16.mxu0 0
    %499 = vmatpush1.bf16.msra.mxu0 0
    %500 = vmatprep.subr.bf16.mxu0 0
    %501 = vmatpush1.bf16.msra.mxu0 0
    %502 = vmatprep.subr.bf16.mxu0 0
    %503 = vmatpush1.bf16.msra.mxu0 0
    %504 = vmatprep.subr.bf16.mxu0 0
    %505 = vmatpush1.bf16.msra.mxu0 0
    %506 = vmatprep.mubr.bf16.mxu0 0
    %507 = vmatmul.mubr.bf16.gmra.mrb[0].mxu0 %v432
    %v508 = vpop.f32.mrb[0].mxu0
    %v509 = vadd.f32 0.0, %v508
    %v510 = vpop.f32.mrb[0].mxu0
    %v511 = vpop.f32.mrb[0].mxu0
    %v512 = vpop.f32.mrb[0].mxu0
    %513 = vdwg.mxu0
    %v514 = vrcp.pop %v509
    %v515 = vmul.f32 %v469, %v514
    %v516 = vsel %vm296, %v295, %v280
    %v517 = vsel %vm300, %v516, %v289
    %v519 = vsel %vm304, %v289, %v290
    %v520 = vsel %vm307, %v519, %v291
    %v521 = vsel %vm310, %v520, %v292
    %v523 = vsel %vm314, %v292, %v293
    %v524 = vsel %vm317, %v523, %v294
    %v526 = vmul.bf16 %v517, %v333
    %v527 = vmul.bf16 %v521, %v334
    %v528 = vmul.bf16 %v524, %v335
    %v529 = vsel %vm296, %v349, %v281
    %v530 = vsel %vm300, %v529, %v343
    %v532 = vsel %vm304, %v343, %v344
    %v533 = vsel %vm307, %v532, %v345
    %v534 = vsel %vm310, %v533, %v346
    %v536 = vsel %vm314, %v346, %v347
    %v537 = vsel %vm317, %v536, %v348
    %v539 = vmul.bf16 %v530, %v333
    %v540 = vmul.bf16 %v534, %v334
    %v541 = vmul.bf16 %v537, %v335
    %v543 = vrot.slane %v279, 4
    %v545 = vsel %vm114, %v543, 0
    %v548 = vsel %vm114, %v526, 0
    %v551 = vsel %vm114, %v527, 0
    %v554 = vsel %vm114, %v528, 0
    %556 = vmatprep.subr.bf16.mxu0 0
    %557 = vmatpush1.bf16.xpose.msra.mxu0 %v548
    %558 = vmatprep.subr.bf16.mxu0 0
    %559 = vmatpush1.bf16.xpose.msra.mxu0 %v551
    %560 = vmatprep.subr.bf16.mxu0 0
    %561 = vmatpush1.bf16.xpose.msra.mxu0 %v554
    %562 = vmatprep.subr.bf16.mxu0 0
    %563 = vmatpush1.bf16.xpose.msra.mxu0 0
    %564 = vmatprep.subr.bf16.mxu0 0
    %565 = vmatpush1.bf16.xpose.msra.mxu0 0
    %566 = vmatprep.subr.bf16.mxu0 0
    %567 = vmatpush1.bf16.xpose.msra.mxu0 0
    %568 = vmatprep.subr.bf16.mxu0 0
    %569 = vmatpush1.bf16.xpose.msra.mxu0 0
    %570 = vmatprep.subr.bf16.mxu0 0
    %571 = vmatpush1.bf16.xpose.msra.mxu0 0
    %572 = vmatprep.subr.bf16.mxu0 0
    %573 = vmatpush1.bf16.xpose.msra.mxu0 0
    %574 = vmatprep.subr.bf16.mxu0 0
    %575 = vmatpush1.bf16.xpose.msra.mxu0 0
    %576 = vmatprep.subr.bf16.mxu0 0
    %577 = vmatpush1.bf16.xpose.msra.mxu0 0
    %578 = vmatprep.subr.bf16.mxu0 0
    %579 = vmatpush1.bf16.xpose.msra.mxu0 0
    %580 = vmatprep.subr.bf16.mxu0 0
    %581 = vmatpush1.bf16.xpose.msra.mxu0 0
    %582 = vmatprep.subr.bf16.mxu0 0
    %583 = vmatpush1.bf16.xpose.msra.mxu0 0
    %584 = vmatprep.subr.bf16.mxu0 0
    %585 = vmatpush1.bf16.xpose.msra.mxu0 0
    %586 = vmatprep.subr.bf16.mxu0 0
    %587 = vmatpush1.bf16.xpose.msra.mxu0 0
    %588 = vmatprep.mubr.bf16.mxu0 0
    %589 = vmatmul.mubr.bf16.gmra.mrb[0].mxu0 %v545
    %v590 = vpop.f32.mrb[0].mxu0
    %v591 = vadd.f32 0.0, %v590
    %v592 = vpop.f32.mrb[0].mxu0
    %v593 = vpop.f32.mrb[0].mxu0
    %v594 = vpop.f32.mrb[0].mxu0
    %595 = vdwg.mxu0
    %v596 = vsel %vm423, %v591, -inf
    %597 = vmax.xlane.f32.xlu0 %v596
    %v598 = vpop.xlane.xlu0 %597
    %v599 = vsub.f32 %v591, %v598
    %v600 = vmul.f32 %v599, 1.442695
    %v601 = vpow.pop %v600
    %v602 = vpack.c.bf16 %v601, %v601
    %v604 = vsel %vm423, %v602, 0
    %606 = vmatprep.subr.bf16.mxu0 0
    %607 = vmatpush1.bf16.msra.mxu0 %v539
    %608 = vmatprep.subr.bf16.mxu0 0
    %609 = vmatpush1.bf16.msra.mxu0 %v540
    %610 = vmatprep.subr.bf16.mxu0 0
    %611 = vmatpush1.bf16.msra.mxu0 %v541
    %612 = vmatprep.subr.bf16.mxu0 0
    %613 = vmatpush1.bf16.msra.mxu0 0
    %614 = vmatprep.subr.bf16.mxu0 0
    %615 = vmatpush1.bf16.msra.mxu0 0
    %616 = vmatprep.subr.bf16.mxu0 0
    %617 = vmatpush1.bf16.msra.mxu0 0
    %618 = vmatprep.subr.bf16.mxu0 0
    %619 = vmatpush1.bf16.msra.mxu0 0
    %620 = vmatprep.subr.bf16.mxu0 0
    %621 = vmatpush1.bf16.msra.mxu0 0
    %622 = vmatprep.subr.bf16.mxu0 0
    %623 = vmatpush1.bf16.msra.mxu0 0
    %624 = vmatprep.subr.bf16.mxu0 0
    %625 = vmatpush1.bf16.msra.mxu0 0
    %626 = vmatprep.subr.bf16.mxu0 0
    %627 = vmatpush1.bf16.msra.mxu0 0
    %628 = vmatprep.subr.bf16.mxu0 0
    %629 = vmatpush1.bf16.msra.mxu0 0
    %630 = vmatprep.subr.bf16.mxu0 0
    %631 = vmatpush1.bf16.msra.mxu0 0
    %632 = vmatprep.subr.bf16.mxu0 0
    %633 = vmatpush1.bf16.msra.mxu0 0
    %634 = vmatprep.subr.bf16.mxu0 0
    %635 = vmatpush1.bf16.msra.mxu0 0
    %636 = vmatprep.subr.bf16.mxu0 0
    %637 = vmatpush1.bf16.msra.mxu0 0
    %638 = vmatprep.mubr.bf16.mxu0 0
    %639 = vmatmul.mubr.bf16.gmra.mrb[0].mxu0 %v604
    %v640 = vpop.f32.mrb[0].mxu0
    %v641 = vadd.f32 0.0, %v640
    %v642 = vpop.f32.mrb[0].mxu0
    %v643 = vpop.f32.mrb[0].mxu0
    %v644 = vpop.f32.mrb[0].mxu0
    %645 = vdwg.mxu0
    %646 = vmatprep.subr.bf16.mxu0 0
    %647 = vmatpush1.bf16.msra.mxu0 %v333
    %648 = vmatprep.subr.bf16.mxu0 0
    %649 = vmatpush1.bf16.msra.mxu0 %v334
    %650 = vmatprep.subr.bf16.mxu0 0
    %651 = vmatpush1.bf16.msra.mxu0 %v335
    %652 = vmatprep.subr.bf16.mxu0 0
    %653 = vmatpush1.bf16.msra.mxu0 0
    %654 = vmatprep.subr.bf16.mxu0 0
    %655 = vmatpush1.bf16.msra.mxu0 0
    %656 = vmatprep.subr.bf16.mxu0 0
    %657 = vmatpush1.bf16.msra.mxu0 0
    %658 = vmatprep.subr.bf16.mxu0 0
    %659 = vmatpush1.bf16.msra.mxu0 0
    %660 = vmatprep.subr.bf16.mxu0 0
    %661 = vmatpush1.bf16.msra.mxu0 0
    %662 = vmatprep.subr.bf16.mxu0 0
    %663 = vmatpush1.bf16.msra.mxu0 0
    %664 = vmatprep.subr.bf16.mxu0 0
    %665 = vmatpush1.bf16.msra.mxu0 0
    %666 = vmatprep.subr.bf16.mxu0 0
    %667 = vmatpush1.bf16.msra.mxu0 0
    %668 = vmatprep.subr.bf16.mxu0 0
    %669 = vmatpush1.bf16.msra.mxu0 0
    %670 = vmatprep.subr.bf16.mxu0 0
    %671 = vmatpush1.bf16.msra.mxu0 0
    %672 = vmatprep.subr.bf16.mxu0 0
    %673 = vmatpush1.bf16.msra.mxu0 0
    %674 = vmatprep.subr.bf16.mxu0 0
    %675 = vmatpush1.bf16.msra.mxu0 0
    %676 = vmatprep.subr.bf16.mxu0 0
    %677 = vmatpush1.bf16.msra.mxu0 0
    %678 = vmatprep.mubr.bf16.mxu0 0
    %679 = vmatmul.mubr.bf16.gmra.mrb[0].mxu0 %v604
    %v680 = vpop.f32.mrb[0].mxu0
    %v681 = vadd.f32 0.0, %v680
    %v682 = vpop.f32.mrb[0].mxu0
    %v683 = vpop.f32.mrb[0].mxu0
    %v684 = vpop.f32.mrb[0].mxu0
    %685 = vdwg.mxu0
    %v686 = vrcp.pop %v681
    %v687 = vmul.f32 %v641, %v686
    %v688 = vpack.c.bf16 %v687, %v515
    %v689 = vld [vmem:[#allocation8] sm:$0xf]
    %v690 = vld [vmem:[#allocation8 + $0x4] sm:$0xf]
    %v691 = vld [vmem:[#allocation8 + $0x8] sm:$0xf]
    %v692 = vld [vmem:[#allocation8 + $0xc] sm:$0xf]
    %v693 = vld [vmem:[%s7] sm:$0x1]
    %v695 = vlaneseq
    %v696 = vshrl.u32 %v695, 7
    %v697 = vsub.s32 0, %v696
    %v698 = vrot.slane %v693, %v697
    %v704 = vunpack.c.l.b16 %v689
    %v705 = vunpack.c.l.b16 %v690
    %v706 = vunpack.c.l.b16 %v691
    %v707 = vunpack.c.l.b16 %v692
    %v708 = vpack.c.b16 %v705, %v704
    %v709 = vpack.c.b16 %v707, %v706
    %v713 = vsel %vm114, %v688, 0
    %715 = vmatprep.subr.bf16.mxu0 0
    %716 = vmatpush1.bf16.msra.mxu0 %v708
    %717 = vmatprep.subr.bf16.mxu0 0
    %718 = vmatpush1.bf16.msra.mxu0 %v709
    %719 = vmatprep.subr.bf16.mxu0 0
    %720 = vmatpush1.bf16.msra.mxu0 0
    %721 = vmatprep.subr.bf16.mxu0 0
    %722 = vmatpush1.bf16.msra.mxu0 0
    %723 = vmatprep.subr.bf16.mxu0 0
    %724 = vmatpush1.bf16.msra.mxu0 0
    %725 = vmatprep.subr.bf16.mxu0 0
    %726 = vmatpush1.bf16.msra.mxu0 0
    %727 = vmatprep.subr.bf16.mxu0 0
    %728 = vmatpush1.bf16.msra.mxu0 0
    %729 = vmatprep.subr.bf16.mxu0 0
    %730 = vmatpush1.bf16.msra.mxu0 0
    %731 = vmatprep.subr.bf16.mxu0 0
    %732 = vmatpush1.bf16.msra.mxu0 0
    %733 = vmatprep.subr.bf16.mxu0 0
    %734 = vmatpush1.bf16.msra.mxu0 0
    %735 = vmatprep.subr.bf16.mxu0 0
    %736 = vmatpush1.bf16.msra.mxu0 0
    %737 = vmatprep.subr.bf16.mxu0 0
    %738 = vmatpush1.bf16.msra.mxu0 0
    %739 = vmatprep.subr.bf16.mxu0 0
    %740 = vmatpush1.bf16.msra.mxu0 0
    %741 = vmatprep.subr.bf16.mxu0 0
    %742 = vmatpush1.bf16.msra.mxu0 0
    %743 = vmatprep.subr.bf16.mxu0 0
    %744 = vmatpush1.bf16.msra.mxu0 0
    %745 = vmatprep.subr.bf16.mxu0 0
    %746 = vmatpush1.bf16.msra.mxu0 0
    %747 = vmatprep.mubr.bf16.mxu0 0
    %748 = vmatmul.mubr.bf16.gmra.mrb[0].mxu0 %v713
    %v749 = vpop.f32.mrb[0].mxu0
    %v750 = vadd.f32 %v698, %v749
    %v751 = vpop.f32.mrb[0].mxu0
    %v752 = vpop.f32.mrb[0].mxu0
    %v753 = vadd.f32 %v698, %v752
    %v754 = vpop.f32.mrb[0].mxu0
    %755 = vdwg.mxu0
    %756 = vst.msk [vmem:[#allocation10] sm:$0xff] %vm114, %v750
    %757 = vst.msk [vmem:[#allocation10 + $0x8] sm:$0xff] %vm114, %v753
    // Predicated region
    $region54: #{tpu_custom_call.1} parent=1 // pred_check
      _
    $region55: #{tpu_custom_call.1} parent=1 // pred_check_branch
      %759 = sbr.rel (0) target = $region57
    $region56: #{tpu_custom_call.1} parent=1 // pred_region
      %s761 = ssub.s32 256, 256
      %762 = vsyncadd [#allocation4], %s761
      %s763 = sshll.u32 [#allocation10], 4
      %s764 = int_to_ptr.vmem [resolvable:$true] %s763
      %769 = dma.vmem_to_hbm [thread:$0]  %s764, 256, %s9, [#allocation4], 128, 128, 8
    $region57: #{tpu_custom_call.1} parent=1 // pred_fallthru
      _
    // Predicated region
    $region58: #{tpu_custom_call.1} parent=1 // pred_check
      _
    $region59: #{tpu_custom_call.1} parent=1 // pred_check_branch
      %771 = sbr.rel (0) target = $region61
    $region60: #{tpu_custom_call.1} parent=1 // pred_region
      %772 = dma.done [#allocation4], 256
    $region61: #{tpu_custom_call.1} parent=1 // pred_fallthru
      _
    %773 = vsyncpa [#allocation3], 1
    %774 = vsyncpa [#allocation6], 1
    %775 = vsyncpa [#allocation9], 1
    %776 = vsyncpa [#allocation4], 1

</llo_original>
